<compile_context>
chip_gen: v7x
topology: tpu7x:2x2x1
jax: 0.10.0
libtpu: 0.0.40
codegen_flags: <defaults>
</compile_context>

<pallas_src>
import functools

import jax
import jax.numpy as jnp
from jax.experimental import pallas as pl
from jax.experimental.pallas import tpu as pltpu


def _round_up(a: int, b: int) -> int:
    return (a + b - 1) // b * b


def _vmem_budget_bytes() -> int:
    """Usable scoped-VMEM budget: physical capacity minus ~20% headroom.

    Generation-aware (128 MiB on v5e/v6e, 64 MiB per TC on v7x); conservative
    v7x-sized fallback if the query is unavailable.
    """
    try:
        cap = int(pltpu.get_tpu_info().vmem_capacity_bytes)
    except Exception:  # defensive: never fail the wrapper on an info query
        cap = 64 * 1024 * 1024
    return int(cap * 0.8)


# --------------------------------------------------------------------------
# Kernels
# --------------------------------------------------------------------------
def _conv1d_kernel_fused(x_ref, w_ref, b_ref, o_ref, *, precision=None):
    """Whole K resident in VMEM: one MXU dot + bias, written out directly."""
    acc = jnp.dot(x_ref[...], w_ref[...],
                  preferred_element_type=jnp.float32, precision=precision)
    o_ref[...] = (acc + b_ref[...]).astype(o_ref.dtype)


def _conv1d_kernel_kred(x_ref, w_ref, b_ref, o_ref, acc_ref, *, precision=None):
    """K reduction in tk chunks with an f32 VMEM accumulator (reduction last)."""
    k = pl.program_id(2)

    @pl.when(k == 0)
    def _():
        acc_ref[...] = jnp.zeros_like(acc_ref)

    acc_ref[...] += jnp.dot(x_ref[...], w_ref[...],
                            preferred_element_type=jnp.float32,
                            precision=precision)

    @pl.when(k == pl.num_programs(2) - 1)
    def _():
        o_ref[...] = (acc_ref[...] + b_ref[...]).astype(o_ref.dtype)


# --------------------------------------------------------------------------
# Wrapper
# --------------------------------------------------------------------------
def conv1d(x, w, b, *, tm=None, tn=None, tk=1024, collapse_k_max=4096,
           compute_dtype=None, precision=None):
    """GPT-style Conv1D (rf == 1):  x: (..., nx), w: (nx, nf), b: (nf,).

    Returns x @ w + b with shape (..., nf).
    """
    nx = x.shape[-1]
    nf = w.shape[-1]
    lead = x.shape[:-1]
    out_dtype = x.dtype

    x2 = x.reshape(-1, nx)                       # (M, nx)
    M = x2.shape[0]

    # Optional reduced-precision operands (f32 accumulate is preserved).
    # bf16 halves x/w HBM traffic and hits the native MXU path on all gens.
    if compute_dtype is not None:
        x2 = x2.astype(compute_dtype)
        w = w.astype(compute_dtype)
    b2 = b.reshape(1, nf)

    xb = jnp.dtype(x2.dtype).itemsize
    wb = jnp.dtype(w.dtype).itemsize
    ob = jnp.dtype(out_dtype).itemsize
    bb = jnp.dtype(b2.dtype).itemsize

    budget = _vmem_budget_bytes()
    sub = {4: 8, 2: 16, 1: 32}.get(xb, 8)        # dtype-aware sublane quantum

    # ---- tile selection: full-dim blocks for small axes (no padding needed),
    #      large lane-dense tiles otherwise; partial trailing blocks tolerated.
    if tm is None:
        tm = 512
    tm = M if M <= tm else _round_up(tm, sub)
    if tn is None:
        tn = 512
    tn = nf if nf <= tn else _round_up(tn, 128)

    collapse_k = nx <= collapse_k_max

    if collapse_k:
        # ------------------------------------------------------------------
        # Path A: whole weight resident in VMEM, 1-D grid over M.
        #   w and b DMA'd once (constant index map), x streamed exactly once.
        # ------------------------------------------------------------------
        w_res_bytes = nx * nf * wb
        tm_a = tm
        while True:
            est_a = (2 * w_res_bytes + 2 * tm_a * nx * xb
                     + 2 * tm_a * nf * ob + 2 * nf * bb)
            if est_a <= budget or tm_a <= 128:
                break
            tm_a = max(128, _round_up(tm_a // 2, sub))
        m_blocks_a = pl.cdiv(M, tm_a)
        # Require >=2 M blocks so the "parallel" axis can feed both
        # TensorCores on v7x and DMA/compute overlap has something to overlap.
        if est_a <= budget and m_blocks_a >= 2:
            kern = functools.partial(_conv1d_kernel_fused, precision=precision)
            ce = pl.CostEstimate(
                flops=2 * M * nx * nf,
                transcendentals=0,
                bytes_accessed=int(M * nx * xb + nx * nf * wb
                                   + M * nf * ob + nf * bb))
            vmem_limit = int(min(budget,
                                 max(int(est_a * 1.25) + (1 << 20), 8 << 20)))
            out = pl.pallas_call(
                kern,
                out_shape=jax.ShapeDtypeStruct((M, nf), out_dtype),
                grid_spec=pltpu.PrefetchScalarGridSpec(
                    num_scalar_prefetch=0,
                    grid=(m_blocks_a,),
                    in_specs=[
                        pl.BlockSpec((tm_a, nx), lambda i: (i, 0)),  # x tile
                        pl.BlockSpec((nx, nf), lambda i: (0, 0)),    # full w (resident)
                        pl.BlockSpec((1, nf), lambda i: (0, 0)),     # full bias
                    ],
                    out_specs=pl.BlockSpec((tm_a, nf), lambda i: (i, 0)),
                ),
                compiler_params=pltpu.CompilerParams(
                    dimension_semantics=("parallel",),
                    vmem_limit_bytes=vmem_limit,
                ),
                cost_estimate=ce,
            )(x2, w, b2)
            return out.reshape(*lead, nf)

        # ------------------------------------------------------------------
        # Path B: whole K resident, weight tiled along N.
        #   Grid is (N outer, M inner) so each (nx, tn) weight block stays
        #   resident across the full M sweep -> weight read once in total.
        # ------------------------------------------------------------------
        if pl.cdiv(M, tm) == 1 and nf >= 256:
            # decode-style shapes: split N so v7x's two TensorCores both work
            tn = min(tn, _round_up(pl.cdiv(nf, 2), 128))
        while True:
            est_b = (2 * (tm * nx * xb + nx * tn * wb + tm * tn * ob)
                     + 2 * tn * bb)
            if est_b <= budget or (tm <= 128 and tn <= 128):
                break
            if tm >= tn and tm > 128:
                tm = max(128, _round_up(tm // 2, sub))
            elif tn > 128:
                tn = max(128, _round_up(tn // 2, 128))
            else:
                tm = max(128, _round_up(tm // 2, sub))
        m_blocks = pl.cdiv(M, tm)
        n_blocks = pl.cdiv(nf, tn)

        kern = functools.partial(_conv1d_kernel_fused, precision=precision)
        ce = pl.CostEstimate(
            flops=2 * M * nx * nf,
            transcendentals=0,
            bytes_accessed=int(M * nx * xb * n_blocks + nx * nf * wb
                               + M * nf * ob + nf * bb))
        vmem_limit = int(min(budget,
                             max(int(est_b * 1.25) + (1 << 20), 8 << 20)))
        out = pl.pallas_call(
            kern,
            out_shape=jax.ShapeDtypeStruct((M, nf), out_dtype),
            grid_spec=pltpu.PrefetchScalarGridSpec(
                num_scalar_prefetch=0,
                grid=(n_blocks, m_blocks),                  # j outer, i inner
                in_specs=[
                    pl.BlockSpec((tm, nx), lambda j, i: (i, 0)),  # x tile
                    pl.BlockSpec((nx, tn), lambda j, i: (0, j)),  # w tile (resident over i)
                    pl.BlockSpec((1, tn), lambda j, i: (0, j)),   # bias tile
                ],
                out_specs=pl.BlockSpec((tm, tn), lambda j, i: (i, j)),
            ),
            compiler_params=pltpu.CompilerParams(
                dimension_semantics=("parallel", "parallel"),
                vmem_limit_bytes=vmem_limit,
            ),
            cost_estimate=ce,
        )(x2, w, b2)
        return out.reshape(*lead, nf)

    # ----------------------------------------------------------------------
    # Path C: K too large to keep resident -> 3-D grid, K reduction last,
    #   f32 VMEM accumulator.  Large tk amortizes the per-step accumulator
    #   read-modify-write (matters most on v5e/v6e MRF; v7x MRB accumulates
    #   in place) and the ~0.35 us grid-step overhead.
    # ----------------------------------------------------------------------
    tk = _round_up(max(tk, 128), 128)
    while True:
        est_c = (2 * (tm * tk * xb + tk * tn * wb + tm * tn * ob)
                 + tm * tn * 4 + 2 * tn * bb)
        if est_c <= budget or (tm <= 128 and tn <= 128 and tk <= 512):
            break
        if tk > 512:
            tk = max(512, _round_up(tk // 2, 128))
        elif tm >= tn and tm > 128:
            tm = max(128, _round_up(tm // 2, sub))
        elif tn > 128:
            tn = max(128, _round_up(tn // 2, 128))
        else:
            break

    Kp = _round_up(nx, tk)
    if Kp != nx:
        # Zero-pad K only: stale K elements would contaminate valid sums.
        # M/N partial blocks are handled without any padding copies.
        # TODO(synk): pad the weight once at parameter-setup time, not per call.
        x2 = jnp.pad(x2, ((0, 0), (0, Kp - nx)))
        w = jnp.pad(w, ((0, Kp - nx), (0, 0)))

    m_blocks = pl.cdiv(M, tm)
    n_blocks = pl.cdiv(nf, tn)
    k_blocks = Kp // tk

    kern = functools.partial(_conv1d_kernel_kred, precision=precision)
    ce = pl.CostEstimate(
        flops=2 * M * Kp * nf,
        transcendentals=0,
        bytes_accessed=int(M * Kp * xb * n_blocks + Kp * nf * wb * m_blocks
                           + M * nf * ob + nf * bb))
    vmem_limit = int(min(budget, max(int(est_c * 1.25) + (1 << 20), 8 << 20)))
    out = pl.pallas_call(
        kern,
        out_shape=jax.ShapeDtypeStruct((M, nf), out_dtype),
        grid_spec=pltpu.PrefetchScalarGridSpec(
            num_scalar_prefetch=0,
            grid=(m_blocks, n_blocks, k_blocks),
            in_specs=[
                pl.BlockSpec((tm, tk), lambda i, j, k: (i, k)),  # x tile
                pl.BlockSpec((tk, tn), lambda i, j, k: (k, j)),  # w tile
                pl.BlockSpec((1, tn), lambda i, j, k: (0, j)),   # bias tile
            ],
            out_specs=pl.BlockSpec((tm, tn), lambda i, j, k: (i, j)),
            scratch_shapes=[pltpu.VMEM((tm, tn), jnp.float32)],
        ),
        compiler_params=pltpu.CompilerParams(
            dimension_semantics=("parallel", "parallel", "arbitrary"),
            vmem_limit_bytes=vmem_limit,
        ),
        cost_estimate=ce,
    )(x2, w, b2)
    return out.reshape(*lead, nf)


# --------------------------------------------------------------------------
# Demo / correctness check
# --------------------------------------------------------------------------
if __name__ == "__main__":
    # Module config: Conv1D(nf, rf=1, nx) — small shapes for the demo.
    B, T, nx, nf = 2, 8, 32, 32

    key = jax.random.PRNGKey(0)
    kx, kw = jax.random.split(key)

    # Deterministic "parameters": w ~ N(0, 0.02), b = 0 (as in __init__).
    w = 0.02 * jax.random.normal(kw, (nx, nf), dtype=jnp.float32)
    b = jnp.zeros((nf,), dtype=jnp.float32)
    x = jax.random.normal(kx, (B, T, nx), dtype=jnp.float32)

    ref = (x.reshape(-1, nx) @ w + b).reshape(B, T, nf)

    # 1) Default path (collapsed K; here a single-block 2-D grid, path B).
    out = jax.block_until_ready(conv1d(x, w, b))
    assert out.shape == (B, T, nf)
    assert jnp.allclose(out, ref, atol=1e-5, rtol=1e-5)

    # 2) Weight-resident 1-D grid path (>= 2 M blocks, path A).
    out_a = jax.block_until_ready(conv1d(x, w, b, tm=8))
    assert jnp.allclose(out_a, ref, atol=1e-5, rtol=1e-5)

    # 3) Optional bf16 operands with f32 accumulate (recommended for perf).
    out_bf = jax.block_until_ready(conv1d(x, w, b, compute_dtype=jnp.bfloat16))
    assert out_bf.dtype == x.dtype
    assert jnp.allclose(out_bf, ref, atol=2e-2, rtol=2e-2)

    # 4) Big-K reduction path (3-D grid, f32 accumulator, path C).
    nx2 = 256
    kx2, kw2 = jax.random.split(kw)
    w2 = 0.02 * jax.random.normal(kw2, (nx2, nf), dtype=jnp.float32)
    x2 = jax.random.normal(kx2, (B, T, nx2), dtype=jnp.float32)
    ref2 = (x2.reshape(-1, nx2) @ w2 + b).reshape(B, T, nf)
    out2 = jax.block_until_ready(conv1d(x2, w2, b, collapse_k_max=0, tk=128))
    assert jnp.allclose(out2, ref2, atol=1e-5, rtol=1e-5)

    print("KERNEL_OK")
</pallas_src>

<mosaic_0001>
module attributes {stable_mosaic.version = 11 : i64} {
  func.func @_conv1d_kernel_fused(%arg0: i32, %arg1: i32, %arg2: memref<16x32xf32, #tpu.memory_space<vmem>>, %arg3: memref<32x32xf32, #tpu.memory_space<vmem>>, %arg4: memref<1x32xf32, #tpu.memory_space<vmem>>, %arg5: memref<16x32xf32, #tpu.memory_space<vmem>>) attributes {dimension_semantics = [#tpu.dimension_semantics<parallel>, #tpu.dimension_semantics<parallel>], iteration_bounds = array<i64: 1, 1>, scalar_prefetch = 0 : i64, scratch_operands = 0 : i64, tpu.core_type = #tpu.core_type<tc>, window_params = [{transform_indices = @transform_0, window_bounds = array<i64: 16, 32>}, {transform_indices = @transform_1, window_bounds = array<i64: 32, 32>}, {transform_indices = @transform_2, window_bounds = array<i64: 1, 32>}, {transform_indices = @transform_3, window_bounds = array<i64: 16, 32>}]} {
    %c0 = arith.constant 0 : index
    %c0_0 = arith.constant 0 : index
    %0 = vector.load %arg2[%c0, %c0_0] : memref<16x32xf32, #tpu.memory_space<vmem>>, vector<16x32xf32>
    %c0_1 = arith.constant 0 : index
    %c0_2 = arith.constant 0 : index
    %1 = vector.load %arg3[%c0_1, %c0_2] : memref<32x32xf32, #tpu.memory_space<vmem>>, vector<32x32xf32>
    %cst = arith.constant dense<0.000000e+00> : vector<16x32xf32>
    %2 = tpu.matmul %0, %1, %cst {dimension_numbers = #tpu.dot_dimension_numbers<[1], [0], [0], [1], [0, 0, 1, 1], [], []>} : vector<16x32xf32>, vector<32x32xf32>, vector<16x32xf32> -> vector<16x32xf32>
    %c0_3 = arith.constant 0 : index
    %c0_4 = arith.constant 0 : index
    %3 = vector.load %arg4[%c0_3, %c0_4] : memref<1x32xf32, #tpu.memory_space<vmem>>, vector<1x32xf32>
    %4 = vector.broadcast %3 : vector<1x32xf32> to vector<16x32xf32>
    %5 = arith.addf %2, %4 : vector<16x32xf32>
    %c0_5 = arith.constant 0 : index
    %c0_6 = arith.constant 0 : index
    %6 = vector.load %arg5[%c0_5, %c0_6] : memref<16x32xf32, #tpu.memory_space<vmem>>, vector<16x32xf32>
    tpu.vector_store %arg5[%c0_5, %c0_6], %5 {strides = array<i32>} : memref<16x32xf32, #tpu.memory_space<vmem>>, vector<16x32xf32>,
    return
  }
  func.func @transform_0(%arg0: i32, %arg1: i32) -> (i32, i32) {
    %c0_i32 = arith.constant 0 : i32
    %c0_i32_0 = arith.constant 0 : i32
    return %arg1, %c0_i32 : i32, i32
  }
  func.func @transform_1(%arg0: i32, %arg1: i32) -> (i32, i32) {
    %c0_i32 = arith.constant 0 : i32
    %c0_i32_0 = arith.constant 0 : i32
    return %c0_i32, %arg0 : i32, i32
  }
  func.func @transform_2(%arg0: i32, %arg1: i32) -> (i32, i32) {
    %c0_i32 = arith.constant 0 : i32
    %c0_i32_0 = arith.constant 0 : i32
    return %c0_i32, %arg0 : i32, i32
  }
  func.func @transform_3(%arg0: i32, %arg1: i32) -> (i32, i32) {
    %c0_i32 = arith.constant 0 : i32
    return %arg1, %arg0 : i32, i32
  }
}

</mosaic_0001>

<llo_original>
// kernel: tpu_custom_call.1
$region0: #{tpu_custom_call.1}
  #allocation0 [shape = 'u32[]', space=smem, size = 0x4, offset = 0x4, fixed_abs, tag = 'smem constant byte address 0x4 - core index']
  #allocation1 [shape = 'u32[144,128]{1,0:T(1,128)}', space=vmem, size = 0x12000, scoped, tag = 'internal scratch']
  %s0 = inlined_call_operand.hbm [shape: f32[16,32], index: 0, kind: input, shape index: {}]
  %s1 = inlined_call_operand.hbm [shape: f32[32,32], index: 1, kind: input, shape index: {}]
  %s2 = inlined_call_operand.vmem [shape: f32[1,32], index: 2, kind: input, shape index: {}]
  %s3 = inlined_call_operand.hbm [shape: f32[16,32], index: 3, kind: output, shape index: {}]
  %s4 = sld [smem:[#allocation0]]
  $region30: #{tpu_custom_call.1} parent=0
    _
  %s6 = ssub.s32 1, %s4
  %s7 = scalar_select 0, %s6, %s4
  $region1: #{tpu_custom_call.1} parent=0
    #allocation2 [shape = 'u8[8192]{0}', space=vmem, size = 0x2000, scoped, tag = 'input window, operand 0, single buffered']
    #allocation3 [shape = 's32[1]{0}', space=sflag, size = 0x4, scoped, tag = 'scoped memory for tpu_custom_call.1']
    #allocation4 [shape = 's32[1]{0}', space=sflag, size = 0x4, scoped, tag = 'scoped memory for tpu_custom_call.1']
    #allocation5 [shape = 'u8[16384]{0}', space=vmem, size = 0x4000, scoped, tag = 'input window, operand 1, single buffered']
    #allocation6 [shape = 's32[1]{0}', space=sflag, size = 0x4, scoped, tag = 'scoped memory for tpu_custom_call.1']
    #allocation7 [shape = 'u8[8192]{0}', space=vmem, size = 0x2000, scoped, tag = 'output window, operand 0, single buffered']
    %8 = vsyncpa [#allocation3], 0
    %9 = vsyncpa [#allocation6], 0
    %10 = vsyncpa [#allocation4], 0
    // Predicated region
    $region2: #{tpu_custom_call.1} parent=1 // pred_check
      _
    $region3: #{tpu_custom_call.1} parent=1 // pred_check_branch
      %12 = sbr.rel (0) target = $region5
    $region4: #{tpu_custom_call.1} parent=1 // pred_region
      %s14 = ssub.s32 256, 256
      %15 = vsyncadd [#allocation3], %s14
      %s16 = sshll.u32 [#allocation2], 4
      %s17 = int_to_ptr.vmem [resolvable:$true] %s16
      %22 = dma.hbm_to_vmem [thread:$0]  %s0, 256, %s17, [#allocation3], 128, 128, 8
    $region5: #{tpu_custom_call.1} parent=1 // pred_fallthru
      _
    // Predicated region
    $region6: #{tpu_custom_call.1} parent=1 // pred_check
      _
    $region7: #{tpu_custom_call.1} parent=1 // pred_check_branch
      %24 = sbr.rel (0) target = $region9
    $region8: #{tpu_custom_call.1} parent=1 // pred_region
      %s26 = ssub.s32 512, 512
      %27 = vsyncadd [#allocation6], %s26
      %s28 = sshll.u32 [#allocation5], 4
      %s29 = int_to_ptr.vmem [resolvable:$true] %s28
      %34 = dma.hbm_to_vmem [thread:$0]  %s1, 512, %s29, [#allocation6], 128, 128, 8
    $region9: #{tpu_custom_call.1} parent=1 // pred_fallthru
      _
    // Predicated region
    $region10: #{tpu_custom_call.1} parent=1 // pred_check
      _
    $region11: #{tpu_custom_call.1} parent=1 // pred_check_branch
      %36 = sbr.rel (0) target = $region13
    $region12: #{tpu_custom_call.1} parent=1 // pred_region
      _
    $region13: #{tpu_custom_call.1} parent=1 // pred_fallthru
      _
    // Predicated region
    $region14: #{tpu_custom_call.1} parent=1 // pred_check
      _
    $region15: #{tpu_custom_call.1} parent=1 // pred_check_branch
      %38 = sbr.rel (0) target = $region17
    $region16: #{tpu_custom_call.1} parent=1 // pred_region
      %39 = dma.done [#allocation3], 256
    $region17: #{tpu_custom_call.1} parent=1 // pred_fallthru
      _
    // Predicated region
    $region18: #{tpu_custom_call.1} parent=1 // pred_check
      _
    $region19: #{tpu_custom_call.1} parent=1 // pred_check_branch
      %41 = sbr.rel (0) target = $region21
    $region20: #{tpu_custom_call.1} parent=1 // pred_region
      %42 = dma.done [#allocation6], 512
    $region21: #{tpu_custom_call.1} parent=1 // pred_fallthru
      _
    %v43 = vld [vmem:[#allocation2] sm:$0xff]
    %v44 = vld [vmem:[#allocation2 + $0x8] sm:$0xff]
    %v45 = vld [vmem:[#allocation5] sm:$0xff]
    %v46 = vld [vmem:[#allocation5 + $0x8] sm:$0xff]
    %v47 = vld [vmem:[#allocation5 + $0x10] sm:$0xff]
    %v48 = vld [vmem:[#allocation5 + $0x18] sm:$0xff]
    %v49 = vld [vmem:[%s2] sm:$0x1]
    %v51 = vlaneseq
    %v52 = vshrl.u32 %v51, 7
    %v53 = vsub.s32 0, %v52
    %v54 = vrot.slane %v49, %v53
    %vm56 = vcmask 261120
    %v58 = vsel %vm56, %v43, 0
    %v61 = vsel %vm56, %v44, 0
    %63 = vmatprep.subr.mxu0 0.0
    %64 = vmatpush1.msra.mxu0 %v45
    %65 = vmatprep.subr.mxu0 0.0
    %66 = vmatpush1.msra.mxu0 %v46
    %67 = vmatprep.subr.mxu0 0.0
    %68 = vmatpush1.msra.mxu0 %v47
    %69 = vmatprep.subr.mxu0 0.0
    %70 = vmatpush1.msra.mxu0 %v48
    %71 = vmatprep.subr.mxu0 0.0
    %72 = vmatpush1.msra.mxu0 0.0
    %73 = vmatprep.subr.mxu0 0.0
    %74 = vmatpush1.msra.mxu0 0.0
    %75 = vmatprep.subr.mxu0 0.0
    %76 = vmatpush1.msra.mxu0 0.0
    %77 = vmatprep.subr.mxu0 0.0
    %78 = vmatpush1.msra.mxu0 0.0
    %79 = vmatprep.subr.mxu0 0.0
    %80 = vmatpush1.msra.mxu0 0.0
    %81 = vmatprep.subr.mxu0 0.0
    %82 = vmatpush1.msra.mxu0 0.0
    %83 = vmatprep.subr.mxu0 0.0
    %84 = vmatpush1.msra.mxu0 0.0
    %85 = vmatprep.subr.mxu0 0.0
    %86 = vmatpush1.msra.mxu0 0.0
    %87 = vmatprep.subr.mxu0 0.0
    %88 = vmatpush1.msra.mxu0 0.0
    %89 = vmatprep.subr.mxu0 0.0
    %90 = vmatpush1.msra.mxu0 0.0
    %91 = vmatprep.subr.mxu0 0.0
    %92 = vmatpush1.msra.mxu0 0.0
    %93 = vmatprep.subr.mxu0 0.0
    %94 = vmatpush1.msra.mxu0 0.0
    %95 = vmatprep.subr.mxu0 0.0
    %96 = vmatpush1.msra.mxu0 0.0
    %97 = vmatprep.subr.mxu0 0.0
    %98 = vmatpush1.msra.mxu0 0.0
    %99 = vmatprep.subr.mxu0 0.0
    %100 = vmatpush1.msra.mxu0 0.0
    %101 = vmatprep.subr.mxu0 0.0
    %102 = vmatpush1.msra.mxu0 0.0
    %103 = vmatprep.subr.mxu0 0.0
    %104 = vmatpush1.msra.mxu0 0.0
    %105 = vmatprep.subr.mxu0 0.0
    %106 = vmatpush1.msra.mxu0 0.0
    %107 = vmatprep.subr.mxu0 0.0
    %108 = vmatpush1.msra.mxu0 0.0
    %109 = vmatprep.subr.mxu0 0.0
    %110 = vmatpush1.msra.mxu0 0.0
    %111 = vmatprep.subr.mxu0 0.0
    %112 = vmatpush1.msra.mxu0 0.0
    %113 = vmatprep.subr.mxu0 0.0
    %114 = vmatpush1.msra.mxu0 0.0
    %115 = vmatprep.subr.mxu0 0.0
    %116 = vmatpush1.msra.mxu0 0.0
    %117 = vmatprep.subr.mxu0 0.0
    %118 = vmatpush1.msra.mxu0 0.0
    %119 = vmatprep.subr.mxu0 0.0
    %120 = vmatpush1.msra.mxu0 0.0
    %121 = vmatprep.subr.mxu0 0.0
    %122 = vmatpush1.msra.mxu0 0.0
    %123 = vmatprep.subr.mxu0 0.0
    %124 = vmatpush1.msra.mxu0 0.0
    %125 = vmatprep.subr.mxu0 0.0
    %126 = vmatpush1.msra.mxu0 0.0
    %127 = vmatprep.mubr.f32.mxu0 0.0
    %128 = vmatmul.mubr.f32.gmra.mrb[0].mxu0 %v58
    %v129 = vpop.f32.mrb[0].mxu0
    %v130 = vadd.f32 %v54, %v129
    %v131 = vpop.f32.mrb[0].mxu0
    %132 = vmatprep.mubr.f32.mxu0 0.0
    %133 = vmatmul.mubr.f32.gmra.mrb[0].mxu0 %v61
    %v134 = vpop.f32.mrb[0].mxu0
    %v135 = vadd.f32 %v54, %v134
    %v136 = vpop.f32.mrb[0].mxu0
    %137 = vdwg.mxu0
    %138 = vst.msk [vmem:[#allocation7] sm:$0xff] %vm56, %v130
    %139 = vst.msk [vmem:[#allocation7 + $0x8] sm:$0xff] %vm56, %v135
    // Predicated region
    $region22: #{tpu_custom_call.1} parent=1 // pred_check
      _
    $region23: #{tpu_custom_call.1} parent=1 // pred_check_branch
      %141 = sbr.rel (0) target = $region25
    $region24: #{tpu_custom_call.1} parent=1 // pred_region
      %s143 = ssub.s32 256, 256
      %144 = vsyncadd [#allocation4], %s143
      %s145 = sshll.u32 [#allocation7], 4
      %s146 = int_to_ptr.vmem [resolvable:$true] %s145
      %151 = dma.vmem_to_hbm [thread:$0]  %s146, 256, %s3, [#allocation4], 128, 128, 8
    $region25: #{tpu_custom_call.1} parent=1 // pred_fallthru
      _
    // Predicated region
    $region26: #{tpu_custom_call.1} parent=1 // pred_check
      _
    $region27: #{tpu_custom_call.1} parent=1 // pred_check_branch
      %153 = sbr.rel (0) target = $region29
    $region28: #{tpu_custom_call.1} parent=1 // pred_region
      %154 = dma.done [#allocation4], 256
    $region29: #{tpu_custom_call.1} parent=1 // pred_fallthru
      _
    %155 = vsyncpa [#allocation3], 1
    %156 = vsyncpa [#allocation6], 1
    %157 = vsyncpa [#allocation4], 1

</llo_original>
